<compile_context>
chip_gen: v5e
topology: v5e:2x2
jax: 0.10.0
libtpu: 0.0.40
codegen_flags: <defaults>
</compile_context>

<pallas_src>
import functools

import jax
import jax.numpy as jnp
from jax.experimental import pallas as pl
from jax.experimental.pallas import tpu as pltpu

EPS = 1e-7
H_DEPTH = 2
BN_EPS = 1e-5


def _round_up(n, m):
    return ((n + m - 1) // m) * m


def _softplus(z):
    # numerically stable softplus (matches torch.nn.functional.softplus)
    return jnp.maximum(z, 0.0) + jnp.log1p(jnp.exp(-jnp.abs(z)))


# --------------------------------------------------------------------------- #
# Kernel
# --------------------------------------------------------------------------- #
def encoder_kernel(x_ref, w0_ref, b0_ref, w1_ref, b1_ref, wh_ref, bh_ref,
                   out_ref, acc_ref, *, out_features, in_features, tk, mask_k):
    k = pl.program_id(1)
    nk = pl.num_programs(1)
    wdt = w0_ref.dtype                       # bf16 matmul inputs, f32 accumulation

    # ----- layer-0 partial matmul over the current K (= in_features) tile -----
    xk = x_ref[...]
    if mask_k:                               # zero the ragged tail of in_features
        col = jax.lax.broadcasted_iota(jnp.int32, xk.shape, 1) + k * tk
        xk = jnp.where(col < in_features, xk, 0.0)
    part = jnp.dot(xk.astype(wdt), w0_ref[...], preferred_element_type=jnp.float32)

    @pl.when(k == 0)
    def _():
        acc_ref[...] = jnp.zeros_like(acc_ref)

    acc_ref[...] += part

    # ----- finalize on the last K step: act -> layer 1 -> fused heads ---------
    @pl.when(k == nk - 1)
    def _():
        # hidden layer 0 epilogue (BN0 affine pre-folded into layer-1 weights)
        h = acc_ref[...] + b0_ref[...]
        h = jnp.maximum(h, 0.2 * h)          # LeakyReLU(0.2)

        # hidden layer 1 (BN1 affine pre-folded into the heads)
        h = jnp.dot(h.astype(wdt), w1_ref[...], preferred_element_type=jnp.float32)
        h = h + b1_ref[...]
        h = jnp.maximum(h, 0.2 * h)

        # fused heads: single lane-dense matmul producing [loc | std_lin | pad]
        z = jnp.dot(h.astype(wdt), wh_ref[...], preferred_element_type=jnp.float32)
        z = z + bh_ref[...]

        # softplus(+EPS) only on the std/pad lanes; single unmasked 128-wide store
        col = jax.lax.broadcasted_iota(jnp.int32, z.shape, 1)
        out_ref[...] = jnp.where(col < out_features, z, _softplus(z) + EPS)


# --------------------------------------------------------------------------- #
# Wrapper
# --------------------------------------------------------------------------- #
def _vmem_capacity_bytes():
    try:
        return int(pltpu.get_tpu_info().vmem_capacity_bytes)
    except Exception:
        return 64 * 1024 * 1024              # conservative (v7x-sized) fallback


def _resident_spec(shape, single_buffer):
    if single_buffer:
        return pl.BlockSpec(shape, lambda i, k: (0, 0), pipeline_mode=pl.Buffered(1))
    return pl.BlockSpec(shape, lambda i, k: (0, 0))


def element_data_encoder(x, prep, out_features, *, tm=1024):
    """x: [batch, in_features] (f32 or bf16).  prep: output of prepare_params()."""
    batch, in_f = x.shape
    kpad, hpad = prep["w0"].shape
    opad = prep["wh"].shape[1]
    tk = int(prep["k_tile"])
    nk = kpad // tk
    mask_k = kpad != in_f                    # ragged K tail -> mask x columns in-kernel

    # ---- per-generation VMEM budget & batch tile size -------------------------
    vmem_cap = _vmem_capacity_bytes()                    # 64 MiB v7x, 128 MiB v5e/v6e
    vmem_limit = min(vmem_cap - (8 << 20), (vmem_cap * 7) // 8)
    budget = vmem_limit - (6 << 20)                      # headroom for compiler scratch

    wbytes = prep["w0"].dtype.itemsize
    w0_copies = 1 if nk == 1 else 2                      # w0 streams when K-tiled
    weight_bytes = (w0_copies * tk * hpad * wbytes
                    + prep["w1"].size * wbytes
                    + prep["wh"].size * wbytes
                    + 3 * hpad * 4 + opad * 4)

    tm_eff = min(tm, _round_up(batch, 8))
    if batch >= 16:                                      # >=2 "parallel" steps (v7x 2nd TC)
        tm_eff = min(tm_eff, _round_up(pl.cdiv(batch, 2), 8))
    tm_eff = max(8, tm_eff)

    def footprint(t):
        return (weight_bytes
                + 2 * t * tk * x.dtype.itemsize          # streamed x tiles (2 buffers)
                + 2 * t * opad * 4                       # streamed out tiles (2 buffers)
                + t * hpad * 4)                          # f32 accumulator scratch

    while tm_eff > 8 and footprint(tm_eff) > budget:
        tm_eff = max(8, _round_up(tm_eff // 2, 8))

    grid = (pl.cdiv(batch, tm_eff), nk)

    kernel = functools.partial(encoder_kernel, out_features=out_features,
                               in_features=in_f, tk=tk, mask_k=mask_k)

    def build(single_buffer):
        x_spec = pl.BlockSpec((tm_eff, tk), lambda i, k: (i, k))
        if nk == 1:                                      # w0 resident when not K-tiled
            w0_spec = _resident_spec((tk, hpad), single_buffer)
        else:                                            # w0 streams along K
            w0_spec = pl.BlockSpec((tk, hpad), lambda i, k: (k, 0))
        return pl.pallas_call(
            kernel,
            out_shape=jax.ShapeDtypeStruct((batch, opad), jnp.float32),
            grid=grid,
            in_specs=[
                x_spec,
                w0_spec,
                _resident_spec(prep["b0"].shape, single_buffer),
                _resident_spec(prep["w1"].shape, single_buffer),
                _resident_spec(prep["b1"].shape, single_buffer),
                _resident_spec(prep["wh"].shape, single_buffer),
                _resident_spec(prep["bh"].shape, single_buffer),
            ],
            out_specs=pl.BlockSpec((tm_eff, opad), lambda i, k: (i, 0)),
            scratch_shapes=[pltpu.VMEM((tm_eff, hpad), jnp.float32)],
            compiler_params=pltpu.CompilerParams(
                dimension_semantics=("parallel", "arbitrary"),
                vmem_limit_bytes=int(vmem_limit),
            ),
            cost_estimate=pl.CostEstimate(
                flops=2 * batch * (kpad * hpad + hpad * hpad + hpad * opad),
                transcendentals=2 * batch * opad,
                bytes_accessed=(batch * in_f * x.dtype.itemsize
                                + (prep["w0"].size + prep["w1"].size
                                   + prep["wh"].size) * wbytes
                                + batch * opad * 4),
            ),
        )

    args = (x, prep["w0"], prep["b0"], prep["w1"], prep["b1"], prep["wh"], prep["bh"])
    try:
        out = build(single_buffer=True)(*args)
    except Exception:
        # Fallback for jax versions where pl.Buffered(1) is not accepted by the
        # TPU lowering; identical math, weights just get default double-buffering.
        out = build(single_buffer=False)(*args)

    loc = out[:, :out_features]
    std = out[:, out_features:2 * out_features]
    return loc, std


# --------------------------------------------------------------------------- #
# Parameter prep: fold BN affine, fuse heads, pad lanes / K tiles, cast to bf16
# --------------------------------------------------------------------------- #
def prepare_params(mp, weight_dtype=jnp.bfloat16, k_tile=512):
    assert k_tile % 128 == 0

    def bn_affine(l):
        s = mp[f"bn_{l}.weight"] / jnp.sqrt(mp[f"bn_{l}.running_var"] + BN_EPS)
        t = mp[f"bn_{l}.bias"] - mp[f"bn_{l}.running_mean"] * s
        return s, t

    s0, t0 = bn_affine(0)
    s1, t1 = bn_affine(1)

    # pre-transpose to [in, out] so the hot path is plain h @ W on the MXU
    w0 = mp["linear_0.weight"].T
    b0 = mp["linear_0.bias"]

    w1 = mp["linear_1.weight"].T
    b1 = mp["linear_1.bias"] + t0 @ w1          # fold BN0 shift
    w1 = s0[:, None] * w1                       # fold BN0 scale

    wl = mp["loc.weight"].T
    bl = mp["loc.bias"] + t1 @ wl               # fold BN1 into loc head
    wl = s1[:, None] * wl
    ws = mp["std_lin.weight"].T
    bs = mp["std_lin.bias"] + t1 @ ws           # fold BN1 into std head
    ws = s1[:, None] * ws

    wh = jnp.concatenate([wl, ws], axis=1)      # fused heads [h, 2*out]
    bh = jnp.concatenate([bl, bs], axis=0)

    in_f, h_dim = w0.shape
    hpad = _round_up(h_dim, 128)
    opad = _round_up(wh.shape[1], 128)

    # K (in_features) tiling only when in_features exceeds one K tile
    if in_f > k_tile:
        kpad, tk = _round_up(in_f, k_tile), k_tile
    else:
        kpad, tk = in_f, in_f

    def padw(w, rows, cols):
        return jnp.pad(w, ((0, rows - w.shape[0]), (0, cols - w.shape[1])))

    def padb(b, cols):
        return jnp.pad(b, (0, cols - b.shape[0])).reshape(1, cols)

    return {
        "w0": padw(w0, kpad, hpad).astype(weight_dtype),
        "b0": padb(b0, hpad).astype(jnp.float32),
        "w1": padw(w1, hpad, hpad).astype(weight_dtype),
        "b1": padb(b1, hpad).astype(jnp.float32),
        "wh": padw(wh, hpad, opad).astype(weight_dtype),
        "bh": padb(bh, opad).astype(jnp.float32),
        "k_tile": tk,
    }


# --------------------------------------------------------------------------- #
# Synthetic PyTorch-style module parameters + references
# --------------------------------------------------------------------------- #
def make_module_params(key, in_features, out_features, h_dim):
    mp = {}
    ptr = in_features
    for l in range(H_DEPTH):
        key, kw, kb, kg, kbe, km, kv = jax.random.split(key, 7)
        bound = 1.0 / float(ptr) ** 0.5
        mp[f"linear_{l}.weight"] = jax.random.uniform(kw, (h_dim, ptr), jnp.float32, -bound, bound)
        mp[f"linear_{l}.bias"] = jax.random.uniform(kb, (h_dim,), jnp.float32, -bound, bound)
        mp[f"bn_{l}.weight"] = jax.random.uniform(kg, (h_dim,), jnp.float32, 0.5, 1.5)
        mp[f"bn_{l}.bias"] = jax.random.uniform(kbe, (h_dim,), jnp.float32, -0.1, 0.1)
        mp[f"bn_{l}.running_mean"] = jax.random.uniform(km, (h_dim,), jnp.float32, -0.1, 0.1)
        mp[f"bn_{l}.running_var"] = jax.random.uniform(kv, (h_dim,), jnp.float32, 0.5, 1.5)
        ptr = h_dim
    key, kwl, kbl, kws, kbs = jax.random.split(key, 5)
    bound = 1.0 / float(ptr) ** 0.5
    mp["loc.weight"] = jax.random.uniform(kwl, (out_features, ptr), jnp.float32, -bound, bound)
    mp["loc.bias"] = jax.random.uniform(kbl, (out_features,), jnp.float32, -bound, bound)
    mp["std_lin.weight"] = jax.random.uniform(kws, (out_features, ptr), jnp.float32, -bound, bound)
    mp["std_lin.bias"] = jax.random.uniform(kbs, (out_features,), jnp.float32, -bound, bound)
    return mp


def reference_module(x, mp):
    """Original eval-mode module semantics in f32."""
    hi = jax.lax.Precision.HIGHEST
    h = x
    for l in range(H_DEPTH):
        h = jnp.matmul(h, mp[f"linear_{l}.weight"].T, precision=hi) + mp[f"linear_{l}.bias"]
        h = jnp.where(h >= 0.0, h, 0.2 * h)
        s = mp[f"bn_{l}.weight"] / jnp.sqrt(mp[f"bn_{l}.running_var"] + BN_EPS)
        h = (h - mp[f"bn_{l}.running_mean"]) * s + mp[f"bn_{l}.bias"]
        # dropout: eval mode -> identity
    loc = jnp.matmul(h, mp["loc.weight"].T, precision=hi) + mp["loc.bias"]
    std = jax.nn.softplus(jnp.matmul(h, mp["std_lin.weight"].T, precision=hi)
                          + mp["std_lin.bias"]) + EPS
    return loc, std


def reference_prepared(x, prep, out_features):
    """Same math as the kernel (folded/fused/bf16-rounded params, f32 accum)."""
    hi = jax.lax.Precision.HIGHEST
    f32 = lambda a: a.astype(jnp.float32)
    wdt = prep["w0"].dtype
    w0 = f32(prep["w0"][: x.shape[1]])               # drop zero K padding rows
    h = jnp.matmul(f32(x.astype(wdt)), w0, precision=hi) + prep["b0"]
    h = jnp.maximum(h, 0.2 * h)
    h = jnp.matmul(f32(h.astype(wdt)), f32(prep["w1"]), precision=hi) + prep["b1"]
    h = jnp.maximum(h, 0.2 * h)
    z = jnp.matmul(f32(h.astype(wdt)), f32(prep["wh"]), precision=hi) + prep["bh"]
    loc = z[:, :out_features]
    std = _softplus(z)[:, out_features:2 * out_features] + EPS
    return loc, std


if __name__ == "__main__":
    def run_case(batch, in_features, out_features, h_dim, k_tile, case):
        key = jax.random.fold_in(jax.random.PRNGKey(0), case)
        key, kx = jax.random.split(key)
        x = jax.random.normal(kx, (batch, in_features), jnp.float32)
        mp = make_module_params(key, in_features, out_features, h_dim)
        prep = prepare_params(mp, k_tile=k_tile)

        loc, std = element_data_encoder(x, prep, out_features)
        jax.block_until_ready((loc, std))
        assert loc.shape == (batch, out_features) and std.shape == (batch, out_features)

        # 1) kernel math vs. identical prepared params (tight)
        loc_p, std_p = reference_prepared(x, prep, out_features)
        assert jnp.allclose(loc, loc_p, atol=2e-3, rtol=2e-3)
        assert jnp.allclose(std, std_p, atol=2e-3, rtol=2e-3)

        # 2) forward semantics vs. the original f32 module math (bf16 weight policy)
        loc_m, std_m = reference_module(x, mp)
        assert jnp.allclose(loc, loc_m, atol=5e-2, rtol=5e-2)
        assert jnp.allclose(std, std_m, atol=5e-2, rtol=5e-2)
        assert bool(jnp.all(std > 0))

    # small, single-K-step path (in_features fits one K tile)
    run_case(batch=8, in_features=16, out_features=8, h_dim=32, k_tile=512, case=0)
    # K-tiled path: ragged batch tile + ragged in_features tail (masked in-kernel)
    run_case(batch=20, in_features=300, out_features=10, h_dim=64, k_tile=128, case=1)

    print("KERNEL_OK")
</pallas_src>

<mosaic_0001>
module attributes {stable_mosaic.version = 11 : i64} {
  func.func @encoder_kernel(%arg0: i32, %arg1: i32, %arg2: memref<8x16xf32, #tpu.memory_space<vmem>>, %arg3: memref<16x128xbf16, #tpu.memory_space<vmem>>, %arg4: memref<1x128xf32, #tpu.memory_space<vmem>>, %arg5: memref<128x128xbf16, #tpu.memory_space<vmem>>, %arg6: memref<1x128xf32, #tpu.memory_space<vmem>>, %arg7: memref<128x128xbf16, #tpu.memory_space<vmem>>, %arg8: memref<1x128xf32, #tpu.memory_space<vmem>>, %arg9: memref<8x128xf32, #tpu.memory_space<vmem>>, %arg10: memref<8x128xf32, #tpu.memory_space<vmem>>) attributes {dimension_semantics = [#tpu.dimension_semantics<parallel>, #tpu.dimension_semantics<arbitrary>], iteration_bounds = array<i64: 1, 1>, scalar_prefetch = 0 : i64, scratch_operands = 1 : i64, tpu.core_type = #tpu.core_type<tc>, window_params = [{transform_indices = @transform_0, window_bounds = array<i64: 8, 16>}, {pipeline_mode = #tpu.pipeline_mode<synchronous>, transform_indices = @transform_1, window_bounds = array<i64: 16, 128>}, {pipeline_mode = #tpu.pipeline_mode<synchronous>, transform_indices = @transform_2, window_bounds = array<i64: 1, 128>}, {pipeline_mode = #tpu.pipeline_mode<synchronous>, transform_indices = @transform_3, window_bounds = array<i64: 128, 128>}, {pipeline_mode = #tpu.pipeline_mode<synchronous>, transform_indices = @transform_4, window_bounds = array<i64: 1, 128>}, {pipeline_mode = #tpu.pipeline_mode<synchronous>, transform_indices = @transform_5, window_bounds = array<i64: 128, 128>}, {pipeline_mode = #tpu.pipeline_mode<synchronous>, transform_indices = @transform_6, window_bounds = array<i64: 1, 128>}, {transform_indices = @transform_7, window_bounds = array<i64: 8, 128>}]} {
    %c0 = arith.constant 0 : index
    %c0_0 = arith.constant 0 : index
    %0 = vector.load %arg2[%c0, %c0_0] : memref<8x16xf32, #tpu.memory_space<vmem>>, vector<8x16xf32>
    %1 = arith.truncf %0 : vector<8x16xf32> to vector<8x16xbf16>
    %c0_1 = arith.constant 0 : index
    %c0_2 = arith.constant 0 : index
    %2 = vector.load %arg3[%c0_1, %c0_2] : memref<16x128xbf16, #tpu.memory_space<vmem>>, vector<16x128xbf16>
    %cst = arith.constant dense<0.000000e+00> : vector<8x128xf32>
    %3 = tpu.matmul %1, %2, %cst {dimension_numbers = #tpu.dot_dimension_numbers<[1], [0], [0], [1], [0, 0, 1, 1], [], []>} : vector<8x16xbf16>, vector<16x128xbf16>, vector<8x128xf32> -> vector<8x128xf32>
    %c0_i32 = arith.constant 0 : i32
    %4 = arith.cmpi eq, %arg1, %c0_i32 : i32
    %5 = arith.extui %4 : i1 to i32
    %c0_i32_3 = arith.constant 0 : i32
    %6 = arith.cmpi ne, %5, %c0_i32_3 : i32
    scf.if %6 {
      %cst_10 = arith.constant 0.000000e+00 : f32
      %13 = vector.broadcast %cst_10 : f32 to vector<8x128xf32>
      %c0_11 = arith.constant 0 : index
      %c0_12 = arith.constant 0 : index
      %14 = vector.load %arg10[%c0_11, %c0_12] : memref<8x128xf32, #tpu.memory_space<vmem>>, vector<8x128xf32>
      tpu.vector_store %arg10[%c0_11, %c0_12], %13 {strides = array<i32>} : memref<8x128xf32, #tpu.memory_space<vmem>>, vector<8x128xf32>,
    } else {
    }
    %c0_4 = arith.constant 0 : index
    %c0_5 = arith.constant 0 : index
    %7 = vector.load %arg10[%c0_4, %c0_5] : memref<8x128xf32, #tpu.memory_space<vmem>>, vector<8x128xf32>
    %8 = arith.addf %7, %3 : vector<8x128xf32>
    %c0_6 = arith.constant 0 : index
    %c0_7 = arith.constant 0 : index
    %9 = vector.load %arg10[%c0_6, %c0_7] : memref<8x128xf32, #tpu.memory_space<vmem>>, vector<8x128xf32>
    tpu.vector_store %arg10[%c0_6, %c0_7], %8 {strides = array<i32>} : memref<8x128xf32, #tpu.memory_space<vmem>>, vector<8x128xf32>,
    %c0_i32_8 = arith.constant 0 : i32
    %10 = arith.cmpi eq, %arg1, %c0_i32_8 : i32
    %11 = arith.extui %10 : i1 to i32
    %c0_i32_9 = arith.constant 0 : i32
    %12 = arith.cmpi ne, %11, %c0_i32_9 : i32
    scf.if %12 {
      %c0_10 = arith.constant 0 : index
      %c0_11 = arith.constant 0 : index
      %13 = vector.load %arg10[%c0_10, %c0_11] : memref<8x128xf32, #tpu.memory_space<vmem>>, vector<8x128xf32>
      %c0_12 = arith.constant 0 : index
      %c0_13 = arith.constant 0 : index
      %14 = vector.load %arg4[%c0_12, %c0_13] : memref<1x128xf32, #tpu.memory_space<vmem>>, vector<1x128xf32>
      %15 = vector.broadcast %14 : vector<1x128xf32> to vector<8x128xf32>
      %16 = arith.addf %13, %15 : vector<8x128xf32>
      %cst_14 = arith.constant 2.000000e-01 : f32
      %17 = vector.broadcast %cst_14 : f32 to vector<8x128xf32>
      %18 = arith.mulf %17, %16 : vector<8x128xf32>
      %19 = arith.maximumf %16, %18 : vector<8x128xf32>
      %20 = arith.truncf %19 : vector<8x128xf32> to vector<8x128xbf16>
      %c0_15 = arith.constant 0 : index
      %c0_16 = arith.constant 0 : index
      %21 = vector.load %arg5[%c0_15, %c0_16] : memref<128x128xbf16, #tpu.memory_space<vmem>>, vector<128x128xbf16>
      %cst_17 = arith.constant dense<0.000000e+00> : vector<8x128xf32>
      %22 = tpu.matmul %20, %21, %cst_17 {dimension_numbers = #tpu.dot_dimension_numbers<[1], [0], [0], [1], [0, 0, 1, 1], [], []>} : vector<8x128xbf16>, vector<128x128xbf16>, vector<8x128xf32> -> vector<8x128xf32>
      %c0_18 = arith.constant 0 : index
      %c0_19 = arith.constant 0 : index
      %23 = vector.load %arg6[%c0_18, %c0_19] : memref<1x128xf32, #tpu.memory_space<vmem>>, vector<1x128xf32>
      %24 = vector.broadcast %23 : vector<1x128xf32> to vector<8x128xf32>
      %25 = arith.addf %22, %24 : vector<8x128xf32>
      %cst_20 = arith.constant 2.000000e-01 : f32
      %26 = vector.broadcast %cst_20 : f32 to vector<8x128xf32>
      %27 = arith.mulf %26, %25 : vector<8x128xf32>
      %28 = arith.maximumf %25, %27 : vector<8x128xf32>
      %29 = arith.truncf %28 : vector<8x128xf32> to vector<8x128xbf16>
      %c0_21 = arith.constant 0 : index
      %c0_22 = arith.constant 0 : index
      %30 = vector.load %arg7[%c0_21, %c0_22] : memref<128x128xbf16, #tpu.memory_space<vmem>>, vector<128x128xbf16>
      %cst_23 = arith.constant dense<0.000000e+00> : vector<8x128xf32>
      %31 = tpu.matmul %29, %30, %cst_23 {dimension_numbers = #tpu.dot_dimension_numbers<[1], [0], [0], [1], [0, 0, 1, 1], [], []>} : vector<8x128xbf16>, vector<128x128xbf16>, vector<8x128xf32> -> vector<8x128xf32>
      %c0_24 = arith.constant 0 : index
      %c0_25 = arith.constant 0 : index
      %32 = vector.load %arg8[%c0_24, %c0_25] : memref<1x128xf32, #tpu.memory_space<vmem>>, vector<1x128xf32>
      %33 = vector.broadcast %32 : vector<1x128xf32> to vector<8x128xf32>
      %34 = arith.addf %31, %33 : vector<8x128xf32>
      %35 = tpu.iota {dimensions = array<i32: 1>} : vector<8x128xi32>
      %c8_i32 = arith.constant 8 : i32
      %36 = vector.broadcast %c8_i32 : i32 to vector<8x128xi32>
      %37 = arith.cmpi slt, %35, %36 : vector<8x128xi32>
      %cst_26 = arith.constant 0.000000e+00 : f32
      %38 = vector.broadcast %cst_26 : f32 to vector<8x128xf32>
      %39 = arith.maximumf %34, %38 : vector<8x128xf32>
      %40 = math.absf %34 : vector<8x128xf32>
      %cst_27 = arith.constant 0.000000e+00 : f32
      %41 = vector.broadcast %cst_27 : f32 to vector<8x128xf32>
      %42 = arith.subf %41, %40 : vector<8x128xf32>
      %43 = math.exp %42 : vector<8x128xf32>
      %44 = math.log1p %43 : vector<8x128xf32>
      %45 = arith.addf %39, %44 : vector<8x128xf32>
      %cst_28 = arith.constant 1.000000e-07 : f32
      %46 = vector.broadcast %cst_28 : f32 to vector<8x128xf32>
      %47 = arith.addf %45, %46 : vector<8x128xf32>
      %48 = arith.select %37, %34, %47 : vector<8x128xi1>, vector<8x128xf32>
      %c0_29 = arith.constant 0 : index
      %c0_30 = arith.constant 0 : index
      %49 = vector.load %arg9[%c0_29, %c0_30] : memref<8x128xf32, #tpu.memory_space<vmem>>, vector<8x128xf32>
      tpu.vector_store %arg9[%c0_29, %c0_30], %48 {strides = array<i32>} : memref<8x128xf32, #tpu.memory_space<vmem>>, vector<8x128xf32>,
    } else {
    }
    return
  }
  func.func @transform_0(%arg0: i32, %arg1: i32) -> (i32, i32) {
    %c0_i32 = arith.constant 0 : i32
    return %arg0, %arg1 : i32, i32
  }
  func.func @transform_1(%arg0: i32, %arg1: i32) -> (i32, i32) {
    %c0_i32 = arith.constant 0 : i32
    %c0_i32_0 = arith.constant 0 : i32
    %c0_i32_1 = arith.constant 0 : i32
    return %c0_i32, %c0_i32_0 : i32, i32
  }
  func.func @transform_2(%arg0: i32, %arg1: i32) -> (i32, i32) {
    %c0_i32 = arith.constant 0 : i32
    %c0_i32_0 = arith.constant 0 : i32
    %c0_i32_1 = arith.constant 0 : i32
    return %c0_i32, %c0_i32_0 : i32, i32
  }
  func.func @transform_3(%arg0: i32, %arg1: i32) -> (i32, i32) {
    %c0_i32 = arith.constant 0 : i32
    %c0_i32_0 = arith.constant 0 : i32
    %c0_i32_1 = arith.constant 0 : i32
    return %c0_i32, %c0_i32_0 : i32, i32
  }
  func.func @transform_4(%arg0: i32, %arg1: i32) -> (i32, i32) {
    %c0_i32 = arith.constant 0 : i32
    %c0_i32_0 = arith.constant 0 : i32
    %c0_i32_1 = arith.constant 0 : i32
    return %c0_i32, %c0_i32_0 : i32, i32
  }
  func.func @transform_5(%arg0: i32, %arg1: i32) -> (i32, i32) {
    %c0_i32 = arith.constant 0 : i32
    %c0_i32_0 = arith.constant 0 : i32
    %c0_i32_1 = arith.constant 0 : i32
    return %c0_i32, %c0_i32_0 : i32, i32
  }
  func.func @transform_6(%arg0: i32, %arg1: i32) -> (i32, i32) {
    %c0_i32 = arith.constant 0 : i32
    %c0_i32_0 = arith.constant 0 : i32
    %c0_i32_1 = arith.constant 0 : i32
    return %c0_i32, %c0_i32_0 : i32, i32
  }
  func.func @transform_7(%arg0: i32, %arg1: i32) -> (i32, i32) {
    %c0_i32 = arith.constant 0 : i32
    %c0_i32_0 = arith.constant 0 : i32
    return %arg0, %c0_i32 : i32, i32
  }
}

module attributes {stable_mosaic.version = 11 : i64} {
  func.func @encoder_kernel(%arg0: i32, %arg1: i32, %arg2: memref<8x16xf32, #tpu.memory_space<vmem>>, %arg3: memref<16x128xbf16, #tpu.memory_space<vmem>>, %arg4: memref<1x128xf32, #tpu.memory_space<vmem>>, %arg5: memref<128x128xbf16, #tpu.memory_space<vmem>>, %arg6: memref<1x128xf32, #tpu.memory_space<vmem>>, %arg7: memref<128x128xbf16, #tpu.memory_space<vmem>>, %arg8: memref<1x128xf32, #tpu.memory_space<vmem>>, %arg9: memref<8x128xf32, #tpu.memory_space<vmem>>, %arg10: memref<8x128xf32, #tpu.memory_space<vmem>>) attributes {dimension_semantics = [#tpu.dimension_semantics<parallel>, #tpu.dimension_semantics<arbitrary>], iteration_bounds = array<i64: 1, 1>, scalar_prefetch = 0 : i64, scratch_operands = 1 : i64, tpu.core_type = #tpu.core_type<tc>, window_params = [{transform_indices = @transform_0, window_bounds = array<i64: 8, 16>}, {pipeline_mode = #tpu.pipeline_mode<synchronous>, transform_indices = @transform_1, window_bounds = array<i64: 16, 128>}, {pipeline_mode = #tpu.pipeline_mode<synchronous>, transform_indices = @transform_2, window_bounds = array<i64: 1, 128>}, {pipeline_mode = #tpu.pipeline_mode<synchronous>, transform_indices = @transform_3, window_bounds = array<i64: 128, 128>}, {pipeline_mode = #tpu.pipeline_mode<synchronous>, transform_indices = @transform_4, window_bounds = array<i64: 1, 128>}, {pipeline_mode = #tpu.pipeline_mode<synchronous>, transform_indices = @transform_5, window_bounds = array<i64: 128, 128>}, {pipeline_mode = #tpu.pipeline_mode<synchronous>, transform_indices = @transform_6, window_bounds = array<i64: 1, 128>}, {transform_indices = @transform_7, window_bounds = array<i64: 8, 128>}]} {
    %c0 = arith.constant 0 : index
    %c0_0 = arith.constant 0 : index
    %0 = vector.load %arg2[%c0, %c0_0] : memref<8x16xf32, #tpu.memory_space<vmem>>, vector<8x16xf32>
    %1 = arith.truncf %0 : vector<8x16xf32> to vector<8x16xbf16>
    %c0_1 = arith.constant 0 : index
    %c0_2 = arith.constant 0 : index
    %2 = vector.load %arg3[%c0_1, %c0_2] : memref<16x128xbf16, #tpu.memory_space<vmem>>, vector<16x128xbf16>
    %cst = arith.constant dense<0.000000e+00> : vector<8x128xf32>
    %3 = tpu.matmul %1, %2, %cst {dimension_numbers = #tpu.dot_dimension_numbers<[1], [0], [0], [1], [0, 0, 1, 1], [], []>} : vector<8x16xbf16>, vector<16x128xbf16>, vector<8x128xf32> -> vector<8x128xf32>
    %c0_i32 = arith.constant 0 : i32
    %4 = arith.cmpi eq, %arg1, %c0_i32 : i32
    %5 = arith.extui %4 : i1 to i32
    %c0_i32_3 = arith.constant 0 : i32
    %6 = arith.cmpi ne, %5, %c0_i32_3 : i32
    scf.if %6 {
      %cst_10 = arith.constant 0.000000e+00 : f32
      %13 = vector.broadcast %cst_10 : f32 to vector<8x128xf32>
      %c0_11 = arith.constant 0 : index
      %c0_12 = arith.constant 0 : index
      %14 = vector.load %arg10[%c0_11, %c0_12] : memref<8x128xf32, #tpu.memory_space<vmem>>, vector<8x128xf32>
      tpu.vector_store %arg10[%c0_11, %c0_12], %13 {strides = array<i32>} : memref<8x128xf32, #tpu.memory_space<vmem>>, vector<8x128xf32>,
    } else {
    }
    %c0_4 = arith.constant 0 : index
    %c0_5 = arith.constant 0 : index
    %7 = vector.load %arg10[%c0_4, %c0_5] : memref<8x128xf32, #tpu.memory_space<vmem>>, vector<8x128xf32>
    %8 = arith.addf %7, %3 : vector<8x128xf32>
    %c0_6 = arith.constant 0 : index
    %c0_7 = arith.constant 0 : index
    %9 = vector.load %arg10[%c0_6, %c0_7] : memref<8x128xf32, #tpu.memory_space<vmem>>, vector<8x128xf32>
    tpu.vector_store %arg10[%c0_6, %c0_7], %8 {strides = array<i32>} : memref<8x128xf32, #tpu.memory_space<vmem>>, vector<8x128xf32>,
    %c0_i32_8 = arith.constant 0 : i32
    %10 = arith.cmpi eq, %arg1, %c0_i32_8 : i32
    %11 = arith.extui %10 : i1 to i32
    %c0_i32_9 = arith.constant 0 : i32
    %12 = arith.cmpi ne, %11, %c0_i32_9 : i32
    scf.if %12 {
      %c0_10 = arith.constant 0 : index
      %c0_11 = arith.constant 0 : index
      %13 = vector.load %arg10[%c0_10, %c0_11] : memref<8x128xf32, #tpu.memory_space<vmem>>, vector<8x128xf32>
      %c0_12 = arith.constant 0 : index
      %c0_13 = arith.constant 0 : index
      %14 = vector.load %arg4[%c0_12, %c0_13] : memref<1x128xf32, #tpu.memory_space<vmem>>, vector<1x128xf32>
      %15 = vector.broadcast %14 : vector<1x128xf32> to vector<8x128xf32>
      %16 = arith.addf %13, %15 : vector<8x128xf32>
      %cst_14 = arith.constant 2.000000e-01 : f32
      %17 = vector.broadcast %cst_14 : f32 to vector<8x128xf32>
      %18 = arith.mulf %17, %16 : vector<8x128xf32>
      %19 = arith.maximumf %16, %18 : vector<8x128xf32>
      %20 = arith.truncf %19 : vector<8x128xf32> to vector<8x128xbf16>
      %c0_15 = arith.constant 0 : index
      %c0_16 = arith.constant 0 : index
      %21 = vector.load %arg5[%c0_15, %c0_16] : memref<128x128xbf16, #tpu.memory_space<vmem>>, vector<128x128xbf16>
      %cst_17 = arith.constant dense<0.000000e+00> : vector<8x128xf32>
      %22 = tpu.matmul %20, %21, %cst_17 {dimension_numbers = #tpu.dot_dimension_numbers<[1], [0], [0], [1], [0, 0, 1, 1], [], []>} : vector<8x128xbf16>, vector<128x128xbf16>, vector<8x128xf32> -> vector<8x128xf32>
      %c0_18 = arith.constant 0 : index
      %c0_19 = arith.constant 0 : index
      %23 = vector.load %arg6[%c0_18, %c0_19] : memref<1x128xf32, #tpu.memory_space<vmem>>, vector<1x128xf32>
      %24 = vector.broadcast %23 : vector<1x128xf32> to vector<8x128xf32>
      %25 = arith.addf %22, %24 : vector<8x128xf32>
      %cst_20 = arith.constant 2.000000e-01 : f32
      %26 = vector.broadcast %cst_20 : f32 to vector<8x128xf32>
      %27 = arith.mulf %26, %25 : vector<8x128xf32>
      %28 = arith.maximumf %25, %27 : vector<8x128xf32>
      %29 = arith.truncf %28 : vector<8x128xf32> to vector<8x128xbf16>
      %c0_21 = arith.constant 0 : index
      %c0_22 = arith.constant 0 : index
      %30 = vector.load %arg7[%c0_21, %c0_22] : memref<128x128xbf16, #tpu.memory_space<vmem>>, vector<128x128xbf16>
      %cst_23 = arith.constant dense<0.000000e+00> : vector<8x128xf32>
      %31 = tpu.matmul %29, %30, %cst_23 {dimension_numbers = #tpu.dot_dimension_numbers<[1], [0], [0], [1], [0, 0, 1, 1], [], []>} : vector<8x128xbf16>, vector<128x128xbf16>, vector<8x128xf32> -> vector<8x128xf32>
      %c0_24 = arith.constant 0 : index
      %c0_25 = arith.constant 0 : index
      %32 = vector.load %arg8[%c0_24, %c0_25] : memref<1x128xf32, #tpu.memory_space<vmem>>, vector<1x128xf32>
      %33 = vector.broadcast %32 : vector<1x128xf32> to vector<8x128xf32>
      %34 = arith.addf %31, %33 : vector<8x128xf32>
      %35 = tpu.iota {dimensions = array<i32: 1>} : vector<8x128xi32>
      %c8_i32 = arith.constant 8 : i32
      %36 = vector.broadcast %c8_i32 : i32 to vector<8x128xi32>
      %37 = arith.cmpi slt, %35, %36 : vector<8x128xi32>
      %cst_26 = arith.constant 0.000000e+00 : f32
      %38 = vector.broadcast %cst_26 : f32 to vector<8x128xf32>
      %39 = arith.maximumf %34, %38 : vector<8x128xf32>
      %40 = math.absf %34 : vector<8x128xf32>
      %cst_27 = arith.constant 0.000000e+00 : f32
      %41 = vector.broadcast %cst_27 : f32 to vector<8x128xf32>
      %42 = arith.subf %41, %40 : vector<8x128xf32>
      %43 = math.exp %42 : vector<8x128xf32>
      %44 = math.log1p %43 : vector<8x128xf32>
      %45 = arith.addf %39, %44 : vector<8x128xf32>
      %cst_28 = arith.constant 1.000000e-07 : f32
      %46 = vector.broadcast %cst_28 : f32 to vector<8x128xf32>
      %47 = arith.addf %45, %46 : vector<8x128xf32>
      %48 = arith.select %37, %34, %47 : vector<8x128xi1>, vector<8x128xf32>
      %c0_29 = arith.constant 0 : index
      %c0_30 = arith.constant 0 : index
      %49 = vector.load %arg9[%c0_29, %c0_30] : memref<8x128xf32, #tpu.memory_space<vmem>>, vector<8x128xf32>
      tpu.vector_store %arg9[%c0_29, %c0_30], %48 {strides = array<i32>} : memref<8x128xf32, #tpu.memory_space<vmem>>, vector<8x128xf32>,
    } else {
    }
    return
  }
  func.func @transform_0(%arg0: i32, %arg1: i32) -> (i32, i32) {
    %c0_i32 = arith.constant 0 : i32
    return %arg0, %arg1 : i32, i32
  }
  func.func @transform_1(%arg0: i32, %arg1: i32) -> (i32, i32) {
    %c0_i32 = arith.constant 0 : i32
    %c0_i32_0 = arith.constant 0 : i32
    %c0_i32_1 = arith.constant 0 : i32
    return %c0_i32, %c0_i32_0 : i32, i32
  }
  func.func @transform_2(%arg0: i32, %arg1: i32) -> (i32, i32) {
    %c0_i32 = arith.constant 0 : i32
    %c0_i32_0 = arith.constant 0 : i32
    %c0_i32_1 = arith.constant 0 : i32
    return %c0_i32, %c0_i32_0 : i32, i32
  }
  func.func @transform_3(%arg0: i32, %arg1: i32) -> (i32, i32) {
    %c0_i32 = arith.constant 0 : i32
    %c0_i32_0 = arith.constant 0 : i32
    %c0_i32_1 = arith.constant 0 : i32
    return %c0_i32, %c0_i32_0 : i32, i32
  }
  func.func @transform_4(%arg0: i32, %arg1: i32) -> (i32, i32) {
    %c0_i32 = arith.constant 0 : i32
    %c0_i32_0 = arith.constant 0 : i32
    %c0_i32_1 = arith.constant 0 : i32
    return %c0_i32, %c0_i32_0 : i32, i32
  }
  func.func @transform_5(%arg0: i32, %arg1: i32) -> (i32, i32) {
    %c0_i32 = arith.constant 0 : i32
    %c0_i32_0 = arith.constant 0 : i32
    %c0_i32_1 = arith.constant 0 : i32
    return %c0_i32, %c0_i32_0 : i32, i32
  }
  func.func @transform_6(%arg0: i32, %arg1: i32) -> (i32, i32) {
    %c0_i32 = arith.constant 0 : i32
    %c0_i32_0 = arith.constant 0 : i32
    %c0_i32_1 = arith.constant 0 : i32
    return %c0_i32, %c0_i32_0 : i32, i32
  }
  func.func @transform_7(%arg0: i32, %arg1: i32) -> (i32, i32) {
    %c0_i32 = arith.constant 0 : i32
    %c0_i32_0 = arith.constant 0 : i32
    return %arg0, %c0_i32 : i32, i32
  }
}

</mosaic_0001>

<llo_original>
// kernel: tpu_custom_call.1
$region0: #{tpu_custom_call.1}
  #allocation0 [shape = 'u32[]', space=smem, size = 0x4, offset = 0x4, fixed_abs, tag = 'smem constant byte address 0x4 - core index']
  #allocation1 [shape = 'u32[72,128]{1,0:T(1,128)}', space=vmem, size = 0x9000, scoped, tag = 'internal scratch']
  #allocation2 [shape = 'f32[8,128]{1,0:T(8,128)}', space=vmem, size = 0x1000, scoped, tag = 'scratch operand']
  %s0 = inlined_call_operand.hbm [shape: f32[8,16], index: 0, kind: input, shape index: {}]
  %s1 = inlined_call_operand.hbm [shape: bf16[16,128], index: 1, kind: input, shape index: {}]
  %s2 = inlined_call_operand.vmem [shape: f32[1,128], index: 2, kind: input, shape index: {}]
  %s3 = inlined_call_operand.hbm [shape: bf16[128,128], index: 3, kind: input, shape index: {}]
  %s4 = inlined_call_operand.vmem [shape: f32[1,128], index: 4, kind: input, shape index: {}]
  %s5 = inlined_call_operand.hbm [shape: bf16[128,128], index: 5, kind: input, shape index: {}]
  %s6 = inlined_call_operand.vmem [shape: f32[1,128], index: 6, kind: input, shape index: {}]
  %s7 = inlined_call_operand.hbm [shape: f32[8,128], index: 7, kind: output, shape index: {}]
  %s8 = sld [smem:[#allocation0]]
  $region62: #{tpu_custom_call.1} parent=0
    _
  %s10 = ssub.s32 1, %s8
  %s11 = scalar_select 0, %s10, %s8
  $region1: #{tpu_custom_call.1} parent=0
    #allocation3 [shape = 'u8[4096]{0}', space=vmem, size = 0x1000, scoped, tag = 'input window, operand 0, single buffered']
    #allocation4 [shape = 's32[1]{0}', space=sflag, size = 0x4, scoped, tag = 'scoped memory for tpu_custom_call.1']
    #allocation5 [shape = 's32[1]{0}', space=sflag, size = 0x4, scoped, tag = 'scoped memory for tpu_custom_call.1']
    #allocation6 [shape = 'u8[4096]{0}', space=vmem, size = 0x1000, scoped, tag = 'input window, operand 1, single buffered']
    #allocation7 [shape = 's32[1]{0}', space=sflag, size = 0x4, scoped, tag = 'scoped memory for tpu_custom_call.1']
    #allocation8 [shape = 'u8[32768]{0}', space=vmem, size = 0x8000, scoped, tag = 'input window, operand 3, single buffered']
    #allocation9 [shape = 'u8[32768]{0}', space=vmem, size = 0x8000, scoped, tag = 'input window, operand 5, single buffered']
    #allocation10 [shape = 's32[1]{0}', space=sflag, size = 0x4, scoped, tag = 'scoped memory for tpu_custom_call.1']
    #allocation11 [shape = 'u8[4096]{0}', space=vmem, size = 0x1000, scoped, tag = 'output window, operand 0, single buffered']
    %12 = vsyncpa [#allocation4], 0
    %13 = vsyncpa [#allocation7], 0
    %14 = vsyncpa [#allocation10], 0
    %15 = vsyncpa [#allocation5], 0
    // Predicated region
    $region2: #{tpu_custom_call.1} parent=1 // pred_check
      _
    $region3: #{tpu_custom_call.1} parent=1 // pred_check_branch
      %17 = sbr.rel (0) target = $region5
    $region4: #{tpu_custom_call.1} parent=1 // pred_region
      %19 = vsyncadd [#allocation4], 0
      %s21 = sshll.u32 %s0, 4
      %s22 = int_to_ptr.hbm [resolvable:$true] %s21
      %s23 = sshll.u32 [#allocation3], 4
      %s24 = int_to_ptr.vmem [resolvable:$true] %s23
      %26 = dma.hbm_to_vmem [thread:$0]  %s22, 128, %s24, [#allocation4]
    $region5: #{tpu_custom_call.1} parent=1 // pred_fallthru
      _
    // Predicated region
    $region6: #{tpu_custom_call.1} parent=1 // pred_check
      _
    $region7: #{tpu_custom_call.1} parent=1 // pred_check_branch
      %28 = sbr.rel (0) target = $region9
    $region8: #{tpu_custom_call.1} parent=1 // pred_region
      %30 = vsyncadd [#allocation7], 0
      %s31 = sshll.u32 %s1, 4
      %s32 = int_to_ptr.hbm [resolvable:$true] %s31
      %s33 = sshll.u32 [#allocation6], 4
      %s34 = int_to_ptr.vmem [resolvable:$true] %s33
      %39 = dma.hbm_to_vmem [thread:$0]  %s32, 128, %s34, [#allocation7], 64, 64, 4
    $region9: #{tpu_custom_call.1} parent=1 // pred_fallthru
      _
    // Predicated region
    $region10: #{tpu_custom_call.1} parent=1 // pred_check
      _
    $region11: #{tpu_custom_call.1} parent=1 // pred_check_branch
      %41 = sbr.rel (0) target = $region13
    $region12: #{tpu_custom_call.1} parent=1 // pred_region
      _
    $region13: #{tpu_custom_call.1} parent=1 // pred_fallthru
      _
    // Predicated region
    $region14: #{tpu_custom_call.1} parent=1 // pred_check
      _
    $region15: #{tpu_custom_call.1} parent=1 // pred_check_branch
      %43 = sbr.rel (0) target = $region17
    $region16: #{tpu_custom_call.1} parent=1 // pred_region
      %45 = vsyncadd [#allocation7], 0
      %s46 = sshll.u32 %s3, 4
      %s47 = int_to_ptr.hbm [resolvable:$true] %s46
      %s48 = sshll.u32 [#allocation8], 4
      %s49 = int_to_ptr.vmem [resolvable:$true] %s48
      %54 = dma.hbm_to_vmem [thread:$0]  %s47, 1024, %s49, [#allocation7], 64, 64, 4
    $region17: #{tpu_custom_call.1} parent=1 // pred_fallthru
      _
    // Predicated region
    $region18: #{tpu_custom_call.1} parent=1 // pred_check
      _
    $region19: #{tpu_custom_call.1} parent=1 // pred_check_branch
      %56 = sbr.rel (0) target = $region21
    $region20: #{tpu_custom_call.1} parent=1 // pred_region
      _
    $region21: #{tpu_custom_call.1} parent=1 // pred_fallthru
      _
    // Predicated region
    $region22: #{tpu_custom_call.1} parent=1 // pred_check
      _
    $region23: #{tpu_custom_call.1} parent=1 // pred_check_branch
      %58 = sbr.rel (0) target = $region25
    $region24: #{tpu_custom_call.1} parent=1 // pred_region
      %60 = vsyncadd [#allocation10], 0
      %s61 = sshll.u32 %s5, 4
      %s62 = int_to_ptr.hbm [resolvable:$true] %s61
      %s63 = sshll.u32 [#allocation9], 4
      %s64 = int_to_ptr.vmem [resolvable:$true] %s63
      %69 = dma.hbm_to_vmem [thread:$0]  %s62, 1024, %s64, [#allocation10], 64, 64, 4
    $region25: #{tpu_custom_call.1} parent=1 // pred_fallthru
      _
    // Predicated region
    $region26: #{tpu_custom_call.1} parent=1 // pred_check
      _
    $region27: #{tpu_custom_call.1} parent=1 // pred_check_branch
      %71 = sbr.rel (0) target = $region29
    $region28: #{tpu_custom_call.1} parent=1 // pred_region
      _
    $region29: #{tpu_custom_call.1} parent=1 // pred_fallthru
      _
    // Predicated region
    $region30: #{tpu_custom_call.1} parent=1 // pred_check
      _
    $region31: #{tpu_custom_call.1} parent=1 // pred_check_branch
      %73 = sbr.rel (0) target = $region33
    $region32: #{tpu_custom_call.1} parent=1 // pred_region
      %75 = dma.done [#allocation4], 128
    $region33: #{tpu_custom_call.1} parent=1 // pred_fallthru
      _
    // Predicated region
    $region34: #{tpu_custom_call.1} parent=1 // pred_check
      _
    $region35: #{tpu_custom_call.1} parent=1 // pred_check_branch
      %77 = sbr.rel (0) target = $region37
    $region36: #{tpu_custom_call.1} parent=1 // pred_region
      %79 = dma.done [#allocation7], 128
    $region37: #{tpu_custom_call.1} parent=1 // pred_fallthru
      _
    // Predicated region
    $region38: #{tpu_custom_call.1} parent=1 // pred_check
      _
    $region39: #{tpu_custom_call.1} parent=1 // pred_check_branch
      %81 = sbr.rel (0) target = $region41
    $region40: #{tpu_custom_call.1} parent=1 // pred_region
      %83 = dma.done [#allocation7], 1024
    $region41: #{tpu_custom_call.1} parent=1 // pred_fallthru
      _
    // Predicated region
    $region42: #{tpu_custom_call.1} parent=1 // pred_check
      _
    $region43: #{tpu_custom_call.1} parent=1 // pred_check_branch
      %85 = sbr.rel (0) target = $region45
    $region44: #{tpu_custom_call.1} parent=1 // pred_region
      %87 = dma.done [#allocation10], 1024
    $region45: #{tpu_custom_call.1} parent=1 // pred_fallthru
      _
    %v89 = vld [vmem:[#allocation3] sm:$0xff]
    %v90 = vpack.c.bf16 %v89, %v89
    %v91 = vld [vmem:[#allocation6] sm:$0xf]
    %v92 = vld [vmem:[#allocation6 + $0x4] sm:$0xf]
    %v95 = vunpack.c.l.b16 %v91
    %v96 = vunpack.c.l.b16 %v92
    %v97 = vpack.c.b16 %v96, %v95
    %vm99 = vcmask 130048
    %v101 = vsel %vm99, %v90, 0
    %103 = vmatpush.bf16.msra.mxu0 0
    %104 = vmatpush.bf16.msra.mxu0 0
    %105 = vmatpush.bf16.msra.mxu0 0
    %106 = vmatpush.bf16.msra.mxu0 0
    %107 = vmatpush.bf16.msra.mxu0 0
    %108 = vmatpush.bf16.msra.mxu0 0
    %109 = vmatpush.bf16.msra.mxu0 0
    %110 = vmatpush.bf16.msra.mxu0 %v97
    %111 = vmatmul.bf16.gmra.mxu0 %v101
    %v112 = vpop.f32.mrf.mxu0
    %v113 = vadd.f32 0.0, %v112
    %v114 = vpop.f32.mrf.mxu0
    %115 = vdwg.mxu0
    %p116 = scmp.eq.s32.totalorder 0, 0
    // Predicated region
    $region46: #{tpu_custom_call.1} parent=1 // pred_check
      %p117 = pneg %p116
    $region47: #{tpu_custom_call.1} parent=1 // pred_check_branch
      %119 = sbr.rel (%p117) target = $region49
    $region48: #{tpu_custom_call.1} parent=1 // pred_region
      %120 = vst [vmem:[#allocation2] sm:$0xff] 0.0
    $region49: #{tpu_custom_call.1} parent=1 // pred_fallthru
      _
    %v121 = vld [vmem:[#allocation2] sm:$0xff]
    %v122 = vadd.f32 %v121, %v113
    %123 = vst [vmem:[#allocation2] sm:$0xff] %v122
    // Predicated region
    $region50: #{tpu_custom_call.1} parent=1 // pred_check
      %p124 = pneg %p116
    $region51: #{tpu_custom_call.1} parent=1 // pred_check_branch
      %126 = sbr.rel (%p124) target = $region53
    $region52: #{tpu_custom_call.1} parent=1 // pred_region
      %v127 = vld [vmem:[#allocation2] sm:$0xff]
      %v128 = vld [vmem:[%s2] sm:$0x1]
      %v130 = vperm.slane %v128, 0
      %v132 = vadd.f32 %v127, %v130
      %v133 = vmul.f32 %v132, 0.2
      %v134 = vmax.f32 %v132, %v133
      %v135 = vpack.c.bf16 %v134, %v134
      %v136 = vld [vmem:[#allocation8] sm:$0xf]
      %v137 = vld [vmem:[#allocation8 + $0x4] sm:$0xf]
      %v138 = vld [vmem:[#allocation8 + $0x8] sm:$0xf]
      %v139 = vld [vmem:[#allocation8 + $0xc] sm:$0xf]
      %v140 = vld [vmem:[#allocation8 + $0x10] sm:$0xf]
      %v141 = vld [vmem:[#allocation8 + $0x14] sm:$0xf]
      %v142 = vld [vmem:[#allocation8 + $0x18] sm:$0xf]
      %v143 = vld [vmem:[#allocation8 + $0x1c] sm:$0xf]
      %v144 = vld [vmem:[#allocation8 + $0x20] sm:$0xf]
      %v145 = vld [vmem:[#allocation8 + $0x24] sm:$0xf]
      %v146 = vld [vmem:[#allocation8 + $0x28] sm:$0xf]
      %v147 = vld [vmem:[#allocation8 + $0x2c] sm:$0xf]
      %v148 = vld [vmem:[#allocation8 + $0x30] sm:$0xf]
      %v149 = vld [vmem:[#allocation8 + $0x34] sm:$0xf]
      %v150 = vld [vmem:[#allocation8 + $0x38] sm:$0xf]
      %v151 = vld [vmem:[#allocation8 + $0x3c] sm:$0xf]
      %v152 = vld [vmem:[%s4] sm:$0x1]
      %v154 = vperm.slane %v152, 0
      %v172 = vunpack.c.l.b16 %v136
      %v173 = vunpack.c.l.b16 %v137
      %v174 = vunpack.c.l.b16 %v138
      %v175 = vunpack.c.l.b16 %v139
      %v176 = vunpack.c.l.b16 %v140
      %v177 = vunpack.c.l.b16 %v141
      %v178 = vunpack.c.l.b16 %v142
      %v179 = vunpack.c.l.b16 %v143
      %v180 = vunpack.c.l.b16 %v144
      %v181 = vunpack.c.l.b16 %v145
      %v182 = vunpack.c.l.b16 %v146
      %v183 = vunpack.c.l.b16 %v147
      %v184 = vunpack.c.l.b16 %v148
      %v185 = vunpack.c.l.b16 %v149
      %v186 = vunpack.c.l.b16 %v150
      %v187 = vunpack.c.l.b16 %v151
      %v188 = vpack.c.b16 %v173, %v172
      %v189 = vpack.c.b16 %v175, %v174
      %v190 = vpack.c.b16 %v177, %v176
      %v191 = vpack.c.b16 %v179, %v178
      %v192 = vpack.c.b16 %v181, %v180
      %v193 = vpack.c.b16 %v183, %v182
      %v194 = vpack.c.b16 %v185, %v184
      %v195 = vpack.c.b16 %v187, %v186
      %204 = vmatpush.bf16.msra.mxu0 %v195
      %205 = vmatpush.bf16.msra.mxu0 %v194
      %206 = vmatpush.bf16.msra.mxu0 %v193
      %207 = vmatpush.bf16.msra.mxu0 %v192
      %208 = vmatpush.bf16.msra.mxu0 %v191
      %209 = vmatpush.bf16.msra.mxu0 %v190
      %210 = vmatpush.bf16.msra.mxu0 %v189
      %211 = vmatpush.bf16.msra.mxu0 %v188
      %212 = vmatmul.bf16.gmra.mxu0 %v135
      %v213 = vpop.f32.mrf.mxu0
      %v214 = vadd.f32 %v154, %v213
      %v215 = vpop.f32.mrf.mxu0
      %216 = vdwg.mxu0
      %v217 = vmul.f32 %v214, 0.2
      %v218 = vmax.f32 %v214, %v217
      %v219 = vpack.c.bf16 %v218, %v218
      %v220 = vld [vmem:[#allocation9] sm:$0xf]
      %v221 = vld [vmem:[#allocation9 + $0x4] sm:$0xf]
      %v222 = vld [vmem:[#allocation9 + $0x8] sm:$0xf]
      %v223 = vld [vmem:[#allocation9 + $0xc] sm:$0xf]
      %v224 = vld [vmem:[#allocation9 + $0x10] sm:$0xf]
      %v225 = vld [vmem:[#allocation9 + $0x14] sm:$0xf]
      %v226 = vld [vmem:[#allocation9 + $0x18] sm:$0xf]
      %v227 = vld [vmem:[#allocation9 + $0x1c] sm:$0xf]
      %v228 = vld [vmem:[#allocation9 + $0x20] sm:$0xf]
      %v229 = vld [vmem:[#allocation9 + $0x24] sm:$0xf]
      %v230 = vld [vmem:[#allocation9 + $0x28] sm:$0xf]
      %v231 = vld [vmem:[#allocation9 + $0x2c] sm:$0xf]
      %v232 = vld [vmem:[#allocation9 + $0x30] sm:$0xf]
      %v233 = vld [vmem:[#allocation9 + $0x34] sm:$0xf]
      %v234 = vld [vmem:[#allocation9 + $0x38] sm:$0xf]
      %v235 = vld [vmem:[#allocation9 + $0x3c] sm:$0xf]
      %v236 = vld [vmem:[%s6] sm:$0x1]
      %v238 = vperm.slane %v236, 0
      %v256 = vunpack.c.l.b16 %v220
      %v257 = vunpack.c.l.b16 %v221
      %v258 = vunpack.c.l.b16 %v222
      %v259 = vunpack.c.l.b16 %v223
      %v260 = vunpack.c.l.b16 %v224
      %v261 = vunpack.c.l.b16 %v225
      %v262 = vunpack.c.l.b16 %v226
      %v263 = vunpack.c.l.b16 %v227
      %v264 = vunpack.c.l.b16 %v228
      %v265 = vunpack.c.l.b16 %v229
      %v266 = vunpack.c.l.b16 %v230
      %v267 = vunpack.c.l.b16 %v231
      %v268 = vunpack.c.l.b16 %v232
      %v269 = vunpack.c.l.b16 %v233
      %v270 = vunpack.c.l.b16 %v234
      %v271 = vunpack.c.l.b16 %v235
      %v272 = vpack.c.b16 %v257, %v256
      %v273 = vpack.c.b16 %v259, %v258
      %v274 = vpack.c.b16 %v261, %v260
      %v275 = vpack.c.b16 %v263, %v262
      %v276 = vpack.c.b16 %v265, %v264
      %v277 = vpack.c.b16 %v267, %v266
      %v278 = vpack.c.b16 %v269, %v268
      %v279 = vpack.c.b16 %v271, %v270
      %288 = vmatpush.bf16.msra.mxu0 %v279
      %289 = vmatpush.bf16.msra.mxu0 %v278
      %290 = vmatpush.bf16.msra.mxu0 %v277
      %291 = vmatpush.bf16.msra.mxu0 %v276
      %292 = vmatpush.bf16.msra.mxu0 %v275
      %293 = vmatpush.bf16.msra.mxu0 %v274
      %294 = vmatpush.bf16.msra.mxu0 %v273
      %295 = vmatpush.bf16.msra.mxu0 %v272
      %296 = vmatmul.bf16.gmra.mxu0 %v219
      %v297 = vpop.f32.mrf.mxu0
      %v298 = vadd.f32 %v238, %v297
      %v299 = vpop.f32.mrf.mxu0
      %300 = vdwg.mxu0
      %v301 = vlaneseq
      %v302 = vand.u32 %v301, 127
      %vm303 = vcmp.lt.s32.totalorder %v302, 8
      %v304 = vmax.f32 %v298, 0.0
      %v305 = vand.u32 2147483647, %v298
      %v306 = vsub.f32 0.0, %v305
      %v307 = vmul.f32 %v306, 1.442695
      %v308 = vpow.pop %v307
      %v309 = vadd.f32 %v308, 1.0
      %v310 = vlog2.pop %v309
      %v311 = vmul.f32 %v310, 0.6931472
      %v312 = vmul.f32 -0.5, %v308
      %v313 = vadd.f32 %v312, 1.0
      %v314 = vmul.f32 %v313, %v308
      %v315 = vand.u32 2147483647, %v308
      %vm316 = vcmp.lt.f32.partialorder %v315, 0.0004427343
      %v317 = vsel %vm316, %v314, %v311
      %v318 = vadd.f32 %v304, %v317
      %v319 = vadd.f32 %v318, 1e-07
      %v320 = vsel %vm303, %v298, %v319
      %321 = vst [vmem:[#allocation11] sm:$0xff] %v320
    $region53: #{tpu_custom_call.1} parent=1 // pred_fallthru
      _
    // Predicated region
    $region54: #{tpu_custom_call.1} parent=1 // pred_check
      _
    $region55: #{tpu_custom_call.1} parent=1 // pred_check_branch
      %323 = sbr.rel (0) target = $region57
    $region56: #{tpu_custom_call.1} parent=1 // pred_region
      %325 = vsyncadd [#allocation5], 0
      %s327 = sshll.u32 [#allocation11], 4
      %s328 = int_to_ptr.vmem [resolvable:$true] %s327
      %s329 = sshll.u32 %s7, 4
      %s330 = int_to_ptr.hbm [resolvable:$true] %s329
      %332 = dma.vmem_to_hbm [thread:$0]  %s328, 128, %s330, [#allocation5]
    $region57: #{tpu_custom_call.1} parent=1 // pred_fallthru
      _
    // Predicated region
    $region58: #{tpu_custom_call.1} parent=1 // pred_check
      _
    $region59: #{tpu_custom_call.1} parent=1 // pred_check_branch
      %334 = sbr.rel (0) target = $region61
    $region60: #{tpu_custom_call.1} parent=1 // pred_region
      %336 = dma.done [#allocation5], 128
    $region61: #{tpu_custom_call.1} parent=1 // pred_fallthru
      _
    %337 = vsyncpa [#allocation4], 1
    %338 = vsyncpa [#allocation7], 1
    %339 = vsyncpa [#allocation10], 1
    %340 = vsyncpa [#allocation5], 1

// kernel: tpu_custom_call.1
$region0: #{tpu_custom_call.1}
  #allocation0 [shape = 'u32[]', space=smem, size = 0x4, offset = 0x4, fixed_abs, tag = 'smem constant byte address 0x4 - core index']
  #allocation1 [shape = 'u32[72,128]{1,0:T(1,128)}', space=vmem, size = 0x9000, scoped, tag = 'internal scratch']
  #allocation2 [shape = 'f32[8,128]{1,0:T(8,128)}', space=vmem, size = 0x1000, scoped, tag = 'scratch operand']
  %s0 = inlined_call_operand.hbm [shape: f32[8,16], index: 0, kind: input, shape index: {}]
  %s1 = inlined_call_operand.hbm [shape: bf16[16,128], index: 1, kind: input, shape index: {}]
  %s2 = inlined_call_operand.vmem [shape: f32[1,128], index: 2, kind: input, shape index: {}]
  %s3 = inlined_call_operand.hbm [shape: bf16[128,128], index: 3, kind: input, shape index: {}]
  %s4 = inlined_call_operand.vmem [shape: f32[1,128], index: 4, kind: input, shape index: {}]
  %s5 = inlined_call_operand.hbm [shape: bf16[128,128], index: 5, kind: input, shape index: {}]
  %s6 = inlined_call_operand.vmem [shape: f32[1,128], index: 6, kind: input, shape index: {}]
  %s7 = inlined_call_operand.hbm [shape: f32[8,128], index: 7, kind: output, shape index: {}]
  %s8 = sld [smem:[#allocation0]]
  $region62: #{tpu_custom_call.1} parent=0
    _
  %s10 = ssub.s32 1, %s8
  %s11 = scalar_select 0, %s10, %s8
  $region1: #{tpu_custom_call.1} parent=0
    #allocation3 [shape = 'u8[4096]{0}', space=vmem, size = 0x1000, scoped, tag = 'input window, operand 0, single buffered']
    #allocation4 [shape = 's32[1]{0}', space=sflag, size = 0x4, scoped, tag = 'scoped memory for tpu_custom_call.1']
    #allocation5 [shape = 's32[1]{0}', space=sflag, size = 0x4, scoped, tag = 'scoped memory for tpu_custom_call.1']
    #allocation6 [shape = 'u8[4096]{0}', space=vmem, size = 0x1000, scoped, tag = 'input window, operand 1, single buffered']
    #allocation7 [shape = 's32[1]{0}', space=sflag, size = 0x4, scoped, tag = 'scoped memory for tpu_custom_call.1']
    #allocation8 [shape = 'u8[32768]{0}', space=vmem, size = 0x8000, scoped, tag = 'input window, operand 3, single buffered']
    #allocation9 [shape = 'u8[32768]{0}', space=vmem, size = 0x8000, scoped, tag = 'input window, operand 5, single buffered']
    #allocation10 [shape = 's32[1]{0}', space=sflag, size = 0x4, scoped, tag = 'scoped memory for tpu_custom_call.1']
    #allocation11 [shape = 'u8[4096]{0}', space=vmem, size = 0x1000, scoped, tag = 'output window, operand 0, single buffered']
    %12 = vsyncpa [#allocation4], 0
    %13 = vsyncpa [#allocation7], 0
    %14 = vsyncpa [#allocation10], 0
    %15 = vsyncpa [#allocation5], 0
    // Predicated region
    $region2: #{tpu_custom_call.1} parent=1 // pred_check
      _
    $region3: #{tpu_custom_call.1} parent=1 // pred_check_branch
      %17 = sbr.rel (0) target = $region5
    $region4: #{tpu_custom_call.1} parent=1 // pred_region
      %19 = vsyncadd [#allocation4], 0
      %s21 = sshll.u32 %s0, 4
      %s22 = int_to_ptr.hbm [resolvable:$true] %s21
      %s23 = sshll.u32 [#allocation3], 4
      %s24 = int_to_ptr.vmem [resolvable:$true] %s23
      %26 = dma.hbm_to_vmem [thread:$0]  %s22, 128, %s24, [#allocation4]
    $region5: #{tpu_custom_call.1} parent=1 // pred_fallthru
      _
    // Predicated region
    $region6: #{tpu_custom_call.1} parent=1 // pred_check
      _
    $region7: #{tpu_custom_call.1} parent=1 // pred_check_branch
      %28 = sbr.rel (0) target = $region9
    $region8: #{tpu_custom_call.1} parent=1 // pred_region
      %30 = vsyncadd [#allocation7], 0
      %s31 = sshll.u32 %s1, 4
      %s32 = int_to_ptr.hbm [resolvable:$true] %s31
      %s33 = sshll.u32 [#allocation6], 4
      %s34 = int_to_ptr.vmem [resolvable:$true] %s33
      %39 = dma.hbm_to_vmem [thread:$0]  %s32, 128, %s34, [#allocation7], 64, 64, 4
    $region9: #{tpu_custom_call.1} parent=1 // pred_fallthru
      _
    // Predicated region
    $region10: #{tpu_custom_call.1} parent=1 // pred_check
      _
    $region11: #{tpu_custom_call.1} parent=1 // pred_check_branch
      %41 = sbr.rel (0) target = $region13
    $region12: #{tpu_custom_call.1} parent=1 // pred_region
      _
    $region13: #{tpu_custom_call.1} parent=1 // pred_fallthru
      _
    // Predicated region
    $region14: #{tpu_custom_call.1} parent=1 // pred_check
      _
    $region15: #{tpu_custom_call.1} parent=1 // pred_check_branch
      %43 = sbr.rel (0) target = $region17
    $region16: #{tpu_custom_call.1} parent=1 // pred_region
      %45 = vsyncadd [#allocation7], 0
      %s46 = sshll.u32 %s3, 4
      %s47 = int_to_ptr.hbm [resolvable:$true] %s46
      %s48 = sshll.u32 [#allocation8], 4
      %s49 = int_to_ptr.vmem [resolvable:$true] %s48
      %54 = dma.hbm_to_vmem [thread:$0]  %s47, 1024, %s49, [#allocation7], 64, 64, 4
    $region17: #{tpu_custom_call.1} parent=1 // pred_fallthru
      _
    // Predicated region
    $region18: #{tpu_custom_call.1} parent=1 // pred_check
      _
    $region19: #{tpu_custom_call.1} parent=1 // pred_check_branch
      %56 = sbr.rel (0) target = $region21
    $region20: #{tpu_custom_call.1} parent=1 // pred_region
      _
    $region21: #{tpu_custom_call.1} parent=1 // pred_fallthru
      _
    // Predicated region
    $region22: #{tpu_custom_call.1} parent=1 // pred_check
      _
    $region23: #{tpu_custom_call.1} parent=1 // pred_check_branch
      %58 = sbr.rel (0) target = $region25
    $region24: #{tpu_custom_call.1} parent=1 // pred_region
      %60 = vsyncadd [#allocation10], 0
      %s61 = sshll.u32 %s5, 4
      %s62 = int_to_ptr.hbm [resolvable:$true] %s61
      %s63 = sshll.u32 [#allocation9], 4
      %s64 = int_to_ptr.vmem [resolvable:$true] %s63
      %69 = dma.hbm_to_vmem [thread:$0]  %s62, 1024, %s64, [#allocation10], 64, 64, 4
    $region25: #{tpu_custom_call.1} parent=1 // pred_fallthru
      _
    // Predicated region
    $region26: #{tpu_custom_call.1} parent=1 // pred_check
      _
    $region27: #{tpu_custom_call.1} parent=1 // pred_check_branch
      %71 = sbr.rel (0) target = $region29
    $region28: #{tpu_custom_call.1} parent=1 // pred_region
      _
    $region29: #{tpu_custom_call.1} parent=1 // pred_fallthru
      _
    // Predicated region
    $region30: #{tpu_custom_call.1} parent=1 // pred_check
      _
    $region31: #{tpu_custom_call.1} parent=1 // pred_check_branch
      %73 = sbr.rel (0) target = $region33
    $region32: #{tpu_custom_call.1} parent=1 // pred_region
      %75 = dma.done [#allocation4], 128
    $region33: #{tpu_custom_call.1} parent=1 // pred_fallthru
      _
    // Predicated region
    $region34: #{tpu_custom_call.1} parent=1 // pred_check
      _
    $region35: #{tpu_custom_call.1} parent=1 // pred_check_branch
      %77 = sbr.rel (0) target = $region37
    $region36: #{tpu_custom_call.1} parent=1 // pred_region
      %79 = dma.done [#allocation7], 128
    $region37: #{tpu_custom_call.1} parent=1 // pred_fallthru
      _
    // Predicated region
    $region38: #{tpu_custom_call.1} parent=1 // pred_check
      _
    $region39: #{tpu_custom_call.1} parent=1 // pred_check_branch
      %81 = sbr.rel (0) target = $region41
    $region40: #{tpu_custom_call.1} parent=1 // pred_region
      %83 = dma.done [#allocation7], 1024
    $region41: #{tpu_custom_call.1} parent=1 // pred_fallthru
      _
    // Predicated region
    $region42: #{tpu_custom_call.1} parent=1 // pred_check
      _
    $region43: #{tpu_custom_call.1} parent=1 // pred_check_branch
      %85 = sbr.rel (0) target = $region45
    $region44: #{tpu_custom_call.1} parent=1 // pred_region
      %87 = dma.done [#allocation10], 1024
    $region45: #{tpu_custom_call.1} parent=1 // pred_fallthru
      _
    %v89 = vld [vmem:[#allocation3] sm:$0xff]
    %v90 = vpack.c.bf16 %v89, %v89
    %v91 = vld [vmem:[#allocation6] sm:$0xf]
    %v92 = vld [vmem:[#allocation6 + $0x4] sm:$0xf]
    %v95 = vunpack.c.l.b16 %v91
    %v96 = vunpack.c.l.b16 %v92
    %v97 = vpack.c.b16 %v96, %v95
    %vm99 = vcmask 130048
    %v101 = vsel %vm99, %v90, 0
    %103 = vmatpush.bf16.msra.mxu0 0
    %104 = vmatpush.bf16.msra.mxu0 0
    %105 = vmatpush.bf16.msra.mxu0 0
    %106 = vmatpush.bf16.msra.mxu0 0
    %107 = vmatpush.bf16.msra.mxu0 0
    %108 = vmatpush.bf16.msra.mxu0 0
    %109 = vmatpush.bf16.msra.mxu0 0
    %110 = vmatpush.bf16.msra.mxu0 %v97
    %111 = vmatmul.bf16.gmra.mxu0 %v101
    %v112 = vpop.f32.mrf.mxu0
    %v113 = vadd.f32 0.0, %v112
    %v114 = vpop.f32.mrf.mxu0
    %115 = vdwg.mxu0
    %p116 = scmp.eq.s32.totalorder 0, 0
    // Predicated region
    $region46: #{tpu_custom_call.1} parent=1 // pred_check
      %p117 = pneg %p116
    $region47: #{tpu_custom_call.1} parent=1 // pred_check_branch
      %119 = sbr.rel (%p117) target = $region49
    $region48: #{tpu_custom_call.1} parent=1 // pred_region
      %120 = vst [vmem:[#allocation2] sm:$0xff] 0.0
    $region49: #{tpu_custom_call.1} parent=1 // pred_fallthru
      _
    %v121 = vld [vmem:[#allocation2] sm:$0xff]
    %v122 = vadd.f32 %v121, %v113
    %123 = vst [vmem:[#allocation2] sm:$0xff] %v122
    // Predicated region
    $region50: #{tpu_custom_call.1} parent=1 // pred_check
      %p124 = pneg %p116
    $region51: #{tpu_custom_call.1} parent=1 // pred_check_branch
      %126 = sbr.rel (%p124) target = $region53
    $region52: #{tpu_custom_call.1} parent=1 // pred_region
      %v127 = vld [vmem:[#allocation2] sm:$0xff]
      %v128 = vld [vmem:[%s2] sm:$0x1]
      %v130 = vperm.slane %v128, 0
      %v132 = vadd.f32 %v127, %v130
      %v133 = vmul.f32 %v132, 0.2
      %v134 = vmax.f32 %v132, %v133
      %v135 = vpack.c.bf16 %v134, %v134
      %v136 = vld [vmem:[#allocation8] sm:$0xf]
      %v137 = vld [vmem:[#allocation8 + $0x4] sm:$0xf]
      %v138 = vld [vmem:[#allocation8 + $0x8] sm:$0xf]
      %v139 = vld [vmem:[#allocation8 + $0xc] sm:$0xf]
      %v140 = vld [vmem:[#allocation8 + $0x10] sm:$0xf]
      %v141 = vld [vmem:[#allocation8 + $0x14] sm:$0xf]
      %v142 = vld [vmem:[#allocation8 + $0x18] sm:$0xf]
      %v143 = vld [vmem:[#allocation8 + $0x1c] sm:$0xf]
      %v144 = vld [vmem:[#allocation8 + $0x20] sm:$0xf]
      %v145 = vld [vmem:[#allocation8 + $0x24] sm:$0xf]
      %v146 = vld [vmem:[#allocation8 + $0x28] sm:$0xf]
      %v147 = vld [vmem:[#allocation8 + $0x2c] sm:$0xf]
      %v148 = vld [vmem:[#allocation8 + $0x30] sm:$0xf]
      %v149 = vld [vmem:[#allocation8 + $0x34] sm:$0xf]
      %v150 = vld [vmem:[#allocation8 + $0x38] sm:$0xf]
      %v151 = vld [vmem:[#allocation8 + $0x3c] sm:$0xf]
      %v152 = vld [vmem:[%s4] sm:$0x1]
      %v154 = vperm.slane %v152, 0
      %v172 = vunpack.c.l.b16 %v136
      %v173 = vunpack.c.l.b16 %v137
      %v174 = vunpack.c.l.b16 %v138
      %v175 = vunpack.c.l.b16 %v139
      %v176 = vunpack.c.l.b16 %v140
      %v177 = vunpack.c.l.b16 %v141
      %v178 = vunpack.c.l.b16 %v142
      %v179 = vunpack.c.l.b16 %v143
      %v180 = vunpack.c.l.b16 %v144
      %v181 = vunpack.c.l.b16 %v145
      %v182 = vunpack.c.l.b16 %v146
      %v183 = vunpack.c.l.b16 %v147
      %v184 = vunpack.c.l.b16 %v148
      %v185 = vunpack.c.l.b16 %v149
      %v186 = vunpack.c.l.b16 %v150
      %v187 = vunpack.c.l.b16 %v151
      %v188 = vpack.c.b16 %v173, %v172
      %v189 = vpack.c.b16 %v175, %v174
      %v190 = vpack.c.b16 %v177, %v176
      %v191 = vpack.c.b16 %v179, %v178
      %v192 = vpack.c.b16 %v181, %v180
      %v193 = vpack.c.b16 %v183, %v182
      %v194 = vpack.c.b16 %v185, %v184
      %v195 = vpack.c.b16 %v187, %v186
      %204 = vmatpush.bf16.msra.mxu0 %v195
      %205 = vmatpush.bf16.msra.mxu0 %v194
      %206 = vmatpush.bf16.msra.mxu0 %v193
      %207 = vmatpush.bf16.msra.mxu0 %v192
      %208 = vmatpush.bf16.msra.mxu0 %v191
      %209 = vmatpush.bf16.msra.mxu0 %v190
      %210 = vmatpush.bf16.msra.mxu0 %v189
      %211 = vmatpush.bf16.msra.mxu0 %v188
      %212 = vmatmul.bf16.gmra.mxu0 %v135
      %v213 = vpop.f32.mrf.mxu0
      %v214 = vadd.f32 %v154, %v213
      %v215 = vpop.f32.mrf.mxu0
      %216 = vdwg.mxu0
      %v217 = vmul.f32 %v214, 0.2
      %v218 = vmax.f32 %v214, %v217
      %v219 = vpack.c.bf16 %v218, %v218
      %v220 = vld [vmem:[#allocation9] sm:$0xf]
      %v221 = vld [vmem:[#allocation9 + $0x4] sm:$0xf]
      %v222 = vld [vmem:[#allocation9 + $0x8] sm:$0xf]
      %v223 = vld [vmem:[#allocation9 + $0xc] sm:$0xf]
      %v224 = vld [vmem:[#allocation9 + $0x10] sm:$0xf]
      %v225 = vld [vmem:[#allocation9 + $0x14] sm:$0xf]
      %v226 = vld [vmem:[#allocation9 + $0x18] sm:$0xf]
      %v227 = vld [vmem:[#allocation9 + $0x1c] sm:$0xf]
      %v228 = vld [vmem:[#allocation9 + $0x20] sm:$0xf]
      %v229 = vld [vmem:[#allocation9 + $0x24] sm:$0xf]
      %v230 = vld [vmem:[#allocation9 + $0x28] sm:$0xf]
      %v231 = vld [vmem:[#allocation9 + $0x2c] sm:$0xf]
      %v232 = vld [vmem:[#allocation9 + $0x30] sm:$0xf]
      %v233 = vld [vmem:[#allocation9 + $0x34] sm:$0xf]
      %v234 = vld [vmem:[#allocation9 + $0x38] sm:$0xf]
      %v235 = vld [vmem:[#allocation9 + $0x3c] sm:$0xf]
      %v236 = vld [vmem:[%s6] sm:$0x1]
      %v238 = vperm.slane %v236, 0
      %v256 = vunpack.c.l.b16 %v220
      %v257 = vunpack.c.l.b16 %v221
      %v258 = vunpack.c.l.b16 %v222
      %v259 = vunpack.c.l.b16 %v223
      %v260 = vunpack.c.l.b16 %v224
      %v261 = vunpack.c.l.b16 %v225
      %v262 = vunpack.c.l.b16 %v226
      %v263 = vunpack.c.l.b16 %v227
      %v264 = vunpack.c.l.b16 %v228
      %v265 = vunpack.c.l.b16 %v229
      %v266 = vunpack.c.l.b16 %v230
      %v267 = vunpack.c.l.b16 %v231
      %v268 = vunpack.c.l.b16 %v232
      %v269 = vunpack.c.l.b16 %v233
      %v270 = vunpack.c.l.b16 %v234
      %v271 = vunpack.c.l.b16 %v235
      %v272 = vpack.c.b16 %v257, %v256
      %v273 = vpack.c.b16 %v259, %v258
      %v274 = vpack.c.b16 %v261, %v260
      %v275 = vpack.c.b16 %v263, %v262
      %v276 = vpack.c.b16 %v265, %v264
      %v277 = vpack.c.b16 %v267, %v266
      %v278 = vpack.c.b16 %v269, %v268
      %v279 = vpack.c.b16 %v271, %v270
      %288 = vmatpush.bf16.msra.mxu0 %v279
      %289 = vmatpush.bf16.msra.mxu0 %v278
      %290 = vmatpush.bf16.msra.mxu0 %v277
      %291 = vmatpush.bf16.msra.mxu0 %v276
      %292 = vmatpush.bf16.msra.mxu0 %v275
      %293 = vmatpush.bf16.msra.mxu0 %v274
      %294 = vmatpush.bf16.msra.mxu0 %v273
      %295 = vmatpush.bf16.msra.mxu0 %v272
      %296 = vmatmul.bf16.gmra.mxu0 %v219
      %v297 = vpop.f32.mrf.mxu0
      %v298 = vadd.f32 %v238, %v297
      %v299 = vpop.f32.mrf.mxu0
      %300 = vdwg.mxu0
      %v301 = vlaneseq
      %v302 = vand.u32 %v301, 127
      %vm303 = vcmp.lt.s32.totalorder %v302, 8
      %v304 = vmax.f32 %v298, 0.0
      %v305 = vand.u32 2147483647, %v298
      %v306 = vsub.f32 0.0, %v305
      %v307 = vmul.f32 %v306, 1.442695
      %v308 = vpow.pop %v307
      %v309 = vadd.f32 %v308, 1.0
      %v310 = vlog2.pop %v309
      %v311 = vmul.f32 %v310, 0.6931472
      %v312 = vmul.f32 -0.5, %v308
      %v313 = vadd.f32 %v312, 1.0
      %v314 = vmul.f32 %v313, %v308
      %v315 = vand.u32 2147483647, %v308
      %vm316 = vcmp.lt.f32.partialorder %v315, 0.0004427343
      %v317 = vsel %vm316, %v314, %v311
      %v318 = vadd.f32 %v304, %v317
      %v319 = vadd.f32 %v318, 1e-07
      %v320 = vsel %vm303, %v298, %v319
      %321 = vst [vmem:[#allocation11] sm:$0xff] %v320
    $region53: #{tpu_custom_call.1} parent=1 // pred_fallthru
      _
    // Predicated region
    $region54: #{tpu_custom_call.1} parent=1 // pred_check
      _
    $region55: #{tpu_custom_call.1} parent=1 // pred_check_branch
      %323 = sbr.rel (0) target = $region57
    $region56: #{tpu_custom_call.1} parent=1 // pred_region
      %325 = vsyncadd [#allocation5], 0
      %s327 = sshll.u32 [#allocation11], 4
      %s328 = int_to_ptr.vmem [resolvable:$true] %s327
      %s329 = sshll.u32 %s7, 4
      %s330 = int_to_ptr.hbm [resolvable:$true] %s329
      %332 = dma.vmem_to_hbm [thread:$0]  %s328, 128, %s330, [#allocation5]
    $region57: #{tpu_custom_call.1} parent=1 // pred_fallthru
      _
    // Predicated region
    $region58: #{tpu_custom_call.1} parent=1 // pred_check
      _
    $region59: #{tpu_custom_call.1} parent=1 // pred_check_branch
      %334 = sbr.rel (0) target = $region61
    $region60: #{tpu_custom_call.1} parent=1 // pred_region
      %336 = dma.done [#allocation5], 128
    $region61: #{tpu_custom_call.1} parent=1 // pred_fallthru
      _
    %337 = vsyncpa [#allocation4], 1
    %338 = vsyncpa [#allocation7], 1
    %339 = vsyncpa [#allocation10], 1
    %340 = vsyncpa [#allocation5], 1

</llo_original>
